<compile_context>
chip_gen: v5e
topology: v5e:2x2
jax: 0.10.0
libtpu: 0.0.40
codegen_flags: <defaults>
</compile_context>

<pallas_src>
import functools

import jax
import jax.numpy as jnp
from jax.experimental import pallas as pl
from jax.experimental.pallas import tpu as pltpu

LEAKY_SLOPE = 0.1
BN_EPS = 1e-5

# Conservative double-buffered working-set budget so tiles fit v7x (64 MiB
# physical VMEM) as well as v5e/v6e.
_VMEM_BUDGET_BYTES = 24 * 1024 * 1024
_VMEM_LIMIT_BYTES = 48 * 1024 * 1024


def _round_up(x, m):
    return ((x + m - 1) // m) * m


def _pad_to_shape(x, shape):
    pads = [(0, t - s) for s, t in zip(x.shape, shape)]
    if all(p == (0, 0) for p in pads):
        return x
    return jnp.pad(x, pads)


# ----------------------------------------------------------------------------
# Pallas kernels: fused (matmul + shift + LeakyReLU).
# ----------------------------------------------------------------------------
def _make_kernel(apply_act, k_tiled):
    if not k_tiled:
        # Full-K in one MXU pass: no reduction grid, no accumulator scratch.
        def kernel(x_ref, w_ref, shift_ref, o_ref):
            y = jnp.dot(x_ref[...], w_ref[...],
                        preferred_element_type=jnp.float32)
            y = y + shift_ref[...]
            if apply_act:
                y = jnp.where(y > 0, y, LEAKY_SLOPE * y)
            o_ref[...] = y
        return kernel

    # Fallback: K tiled on the last grid axis, accumulate directly into the
    # (f32, grid-resident) output block; epilogue applied in-place on last step.
    def kernel(x_ref, w_ref, shift_ref, o_ref):
        k = pl.program_id(2)

        @pl.when(k == 0)
        def _():
            o_ref[...] = jnp.zeros_like(o_ref)

        o_ref[...] += jnp.dot(x_ref[...], w_ref[...],
                              preferred_element_type=jnp.float32)

        @pl.when(k == pl.num_programs(2) - 1)
        def _():
            y = o_ref[...] + shift_ref[...]
            if apply_act:
                y = jnp.where(y > 0, y, LEAKY_SLOPE * y)
            o_ref[...] = y
    return kernel


@functools.partial(jax.jit, static_argnames=("apply_act",))
def fused_matmul(x2d, w, shift, apply_act):
    """x2d: (M, K), w: (K, N) bf16 (BN scale pre-folded), shift: (N,) f32.

    Returns (M, N) f32 = act(x2d @ w + shift).  bf16 MXU operands, f32 acc.
    """
    M, K = x2d.shape
    _, N = w.shape

    Np = _round_up(N, 128)
    # TN: keep >=2 N-blocks for wide layers (v7x has 2 TensorCores).
    TN = 512 if Np % 512 == 0 else (256 if Np % 256 == 0 else 128)
    TM = min(512, _round_up(M, 16))
    Mp = _round_up(M, TM)

    # Prefer a single full-K tile (no accumulator traffic, output written once).
    Kp_full = _round_up(K, 16)
    full_k_bytes = 2 * (TM * Kp_full * 2 + Kp_full * TN * 2 + TM * TN * 4)
    k_tiled = full_k_bytes > _VMEM_BUDGET_BYTES

    if not k_tiled:
        Kp = Kp_full
        grid = (Mp // TM, Np // TN)
        in_specs = [
            pl.BlockSpec((TM, Kp), lambda i, j: (i, 0)),
            pl.BlockSpec((Kp, TN), lambda i, j: (0, j)),
            pl.BlockSpec((1, TN), lambda i, j: (0, j)),
        ]
        out_specs = pl.BlockSpec((TM, TN), lambda i, j: (i, j))
        dims = ("parallel", "parallel")
    else:
        TK = 512
        Kp = _round_up(K, TK)
        grid = (Mp // TM, Np // TN, Kp // TK)
        in_specs = [
            pl.BlockSpec((TM, TK), lambda i, j, k: (i, k)),
            pl.BlockSpec((TK, TN), lambda i, j, k: (k, j)),
            pl.BlockSpec((1, TN), lambda i, j, k: (0, j)),
        ]
        out_specs = pl.BlockSpec((TM, TN), lambda i, j, k: (i, j))
        dims = ("parallel", "parallel", "arbitrary")

    xp = _pad_to_shape(x2d.astype(jnp.bfloat16), (Mp, Kp))
    wp = _pad_to_shape(w.astype(jnp.bfloat16), (Kp, Np))
    sp = _pad_to_shape(shift.astype(jnp.float32).reshape(1, -1), (1, Np))

    out = pl.pallas_call(
        _make_kernel(apply_act, k_tiled),
        out_shape=jax.ShapeDtypeStruct((Mp, Np), jnp.float32),
        grid_spec=pltpu.PrefetchScalarGridSpec(
            num_scalar_prefetch=0,
            grid=grid,
            in_specs=in_specs,
            out_specs=out_specs,
        ),
        compiler_params=pltpu.CompilerParams(
            dimension_semantics=dims,
            vmem_limit_bytes=_VMEM_LIMIT_BYTES),
    )(xp, wp, sp)
    return out[:M, :N]


# ----------------------------------------------------------------------------
# Conv2d: 1x1 is a pure matmul; 3x3 uses bf16 im2col (XLA glue) + fused Pallas
# matmul.
# ----------------------------------------------------------------------------
@functools.partial(jax.jit,
                   static_argnames=("ksize", "stride", "padding", "apply_act"))
def conv2d_fused(x, w, shift, ksize, stride, padding, apply_act):
    # x: (N, H, W, C) f32 ; w: (ksize*ksize*C, Cout) bf16 ; shift: (Cout,) f32
    N, H, W, C = x.shape
    xb = x.astype(jnp.bfloat16)
    if padding > 0:
        xb = jnp.pad(xb, ((0, 0), (padding, padding), (padding, padding), (0, 0)))
    Ho = (H + 2 * padding - ksize) // stride + 1
    Wo = (W + 2 * padding - ksize) // stride + 1
    if ksize == 1 and stride == 1:
        patches = xb.reshape(N * Ho * Wo, C)
    else:
        # TODO(synk): fuse im2col into the Pallas kernel via shifted-window DMA
        # to avoid materializing the k*k-inflated patch matrix in HBM.
        cols = [xb[:, i:i + stride * Ho:stride, j:j + stride * Wo:stride, :]
                for i in range(ksize) for j in range(ksize)]
        patches = jnp.concatenate(cols, axis=-1).reshape(
            N * Ho * Wo, ksize * ksize * C)
    out = fused_matmul(patches, w, shift, apply_act)
    return out.reshape(N, Ho, Wo, -1)


# ----------------------------------------------------------------------------
# Deterministic parameter construction (synthetic init; BN folded into weights).
# ----------------------------------------------------------------------------
class ParamGen:
    def __init__(self, seed=1):
        self.key = jax.random.PRNGKey(seed)

    def next(self):
        self.key, sub = jax.random.split(self.key)
        return sub


def make_conv_bn(pg, cin, cout, k):
    w = jax.random.normal(pg.next(), (k, k, cin, cout), jnp.float32) * 0.05
    gamma = 1.0 + 0.1 * jax.random.normal(pg.next(), (cout,), jnp.float32)
    beta = 0.1 * jax.random.normal(pg.next(), (cout,), jnp.float32)
    mean = 0.1 * jax.random.normal(pg.next(), (cout,), jnp.float32)
    var = jnp.abs(1.0 + 0.1 * jax.random.normal(pg.next(), (cout,), jnp.float32))
    scale = gamma / jnp.sqrt(var + BN_EPS)
    shift = beta - mean * scale
    # Fold BN scale into the (kh, kw, cin, cout)-ordered flattened weights.
    wf = (w.reshape(k * k * cin, cout) * scale[None, :]).astype(jnp.bfloat16)
    return {"w": wf, "shift": shift, "k": k}


def make_conv_bias(pg, cin, cout, k):
    w = (jax.random.normal(pg.next(), (k, k, cin, cout), jnp.float32)
         * 0.05).reshape(k * k * cin, cout).astype(jnp.bfloat16)
    b = 0.05 * jax.random.normal(pg.next(), (cout,), jnp.float32)
    return {"w": w, "shift": b, "k": k}


def conv_bn_lrelu(p, x, stride, padding):
    return conv2d_fused(x, p["w"], p["shift"], p["k"], stride, padding, True)


# ---- ShortcutBlock ----------------------------------------------------------
def shortcut_block_params(pg, channels, in_channels=None):
    cin = in_channels if in_channels is not None else channels
    half = channels // 2
    return {"conv1": make_conv_bn(pg, cin, half, 1),
            "conv2": make_conv_bn(pg, half, channels, 3)}


def shortcut_block(p, x, shortcut=True, route=False):
    y1 = conv_bn_lrelu(p["conv1"], x, 1, 0)
    y = conv_bn_lrelu(p["conv2"], y1, 1, 1)
    if shortcut:
        return y + x
    if route:
        return y, y1
    return y


# ---- DetectBlock ------------------------------------------------------------
def detect_block_params(pg, channels, in_channels, out_channels):
    return {"b1": shortcut_block_params(pg, channels, in_channels),
            "b2": shortcut_block_params(pg, channels),
            "b3": shortcut_block_params(pg, channels),
            "conv": make_conv_bias(pg, channels, out_channels, 1)}


def detect_block(p, x):
    y = shortcut_block(p["b1"], x, shortcut=False)
    y = shortcut_block(p["b2"], y, shortcut=False)
    y, y1 = shortcut_block(p["b3"], y, shortcut=False, route=True)
    c = p["conv"]
    y = conv2d_fused(y, c["w"], c["shift"], c["k"], 1, 0, False)
    return y, y1


# ---- UpsampleBlock ----------------------------------------------------------
def upsample_block_params(pg, channels):
    return {"conv": make_conv_bn(pg, channels, channels // 2, 1)}


def upsample_block(p, x, x1):
    y = conv_bn_lrelu(p["conv"], x, 1, 0)
    N, H, W, C = y.shape
    # F.interpolate(scale_factor=2, mode='bilinear') equivalent (XLA).
    y = jax.image.resize(y, (N, 2 * H, 2 * W, C), method="bilinear")
    return jnp.concatenate([y, x1], axis=-1)


# ---- YoLoNet ----------------------------------------------------------------
def yolonet_params(pg, num_classes, in_channels):
    Nc = 32
    out_ch = (5 + num_classes) * 3
    P = {}
    P["conv1_1"] = make_conv_bn(pg, in_channels, Nc, 3)
    P["conv1_2"] = make_conv_bn(pg, Nc, Nc * 2, 3)
    P["block1_1"] = shortcut_block_params(pg, Nc * 2)
    P["conv2"] = make_conv_bn(pg, Nc * 2, Nc * 4, 3)
    P["block2_1"] = shortcut_block_params(pg, Nc * 4)
    P["block2_2"] = shortcut_block_params(pg, Nc * 4)
    P["conv3"] = make_conv_bn(pg, Nc * 4, Nc * 8, 3)
    for i in range(1, 9):
        P[f"block3_{i}"] = shortcut_block_params(pg, Nc * 8)
    P["conv4"] = make_conv_bn(pg, Nc * 8, Nc * 16, 3)
    for i in range(1, 9):
        P[f"block4_{i}"] = shortcut_block_params(pg, Nc * 16)
    P["conv5"] = make_conv_bn(pg, Nc * 16, Nc * 32, 3)
    for i in range(1, 5):
        P[f"block5_{i}"] = shortcut_block_params(pg, Nc * 32)
    P["detect1"] = detect_block_params(pg, Nc * 32, Nc * 32, out_ch)
    P["upsample1"] = upsample_block_params(pg, Nc * 16)
    P["detect2"] = detect_block_params(pg, Nc * 16, Nc * (16 + 8), out_ch)
    P["upsample2"] = upsample_block_params(pg, Nc * 8)
    P["detect3"] = detect_block_params(pg, Nc * 8, Nc * (8 + 4), out_ch)
    return P


def yolonet_forward(P, x_nchw):
    x = jnp.transpose(x_nchw, (0, 2, 3, 1))  # NCHW -> NHWC
    y = conv_bn_lrelu(P["conv1_1"], x, 1, 1)
    y = conv_bn_lrelu(P["conv1_2"], y, 2, 1)
    y = shortcut_block(P["block1_1"], y)
    y = conv_bn_lrelu(P["conv2"], y, 2, 1)
    y = shortcut_block(P["block2_1"], y)
    y = shortcut_block(P["block2_2"], y)
    y = conv_bn_lrelu(P["conv3"], y, 2, 1)
    for i in range(1, 8):
        y = shortcut_block(P[f"block3_{i}"], y)
    route2 = shortcut_block(P["block3_8"], y)
    y = conv_bn_lrelu(P["conv4"], route2, 2, 1)
    for i in range(1, 8):
        y = shortcut_block(P[f"block4_{i}"], y)
    route1 = shortcut_block(P["block4_8"], y)
    y = conv_bn_lrelu(P["conv5"], route1, 2, 1)
    for i in range(1, 5):
        y = shortcut_block(P[f"block5_{i}"], y)
    # TODO(synk): the deep/detect layers are MXU-starved (M=4..64); keeping the
    # whole ShortcutBlock's weights VMEM-resident in one fused pallas_call would
    # remove repeated weight streaming, left as future work.
    output1, y = detect_block(P["detect1"], y)
    y = upsample_block(P["upsample1"], y, route1)
    output2, y = detect_block(P["detect2"], y)
    y = upsample_block(P["upsample2"], y, route2)
    output3, _ = detect_block(P["detect3"], y)
    to_nchw = lambda a: jnp.transpose(a, (0, 3, 1, 2))
    return to_nchw(output1), to_nchw(output2), to_nchw(output3)


if __name__ == "__main__":
    num_classes = 4            # out_channels = (5 + 4) * 3 = 27
    in_channels = 3
    B, H, W = 1, 64, 64        # small, divisible by the net's /32 downsampling

    x = jax.random.normal(jax.random.PRNGKey(0),
                          (B, in_channels, H, W), jnp.float32)
    pg = ParamGen(seed=1)
    params = yolonet_params(pg, num_classes, in_channels)

    o1, o2, o3 = yolonet_forward(params, x)
    jax.block_until_ready((o1, o2, o3))

    assert o1.shape == (B, 27, H // 32, W // 32)
    assert o2.shape == (B, 27, H // 16, W // 16)
    assert o3.shape == (B, 27, H // 8, W // 8)
    assert bool(jnp.all(jnp.isfinite(o1))) and bool(jnp.all(jnp.isfinite(o2))) \
        and bool(jnp.all(jnp.isfinite(o3)))
    print("KERNEL_OK")
</pallas_src>

<mosaic_0001>
module attributes {stable_mosaic.version = 11 : i64} {
  func.func @kernel(%arg0: i32, %arg1: i32, %arg2: memref<512x32xbf16, #tpu.memory_space<vmem>>, %arg3: memref<32x128xbf16, #tpu.memory_space<vmem>>, %arg4: memref<1x128xf32, #tpu.memory_space<vmem>>, %arg5: memref<512x128xf32, #tpu.memory_space<vmem>>) attributes {dimension_semantics = [#tpu.dimension_semantics<parallel>, #tpu.dimension_semantics<parallel>], iteration_bounds = array<i64: 8, 1>, scalar_prefetch = 0 : i64, scratch_operands = 0 : i64, tpu.core_type = #tpu.core_type<tc>, window_params = [{transform_indices = @transform_0, window_bounds = array<i64: 512, 32>}, {transform_indices = @transform_1, window_bounds = array<i64: 32, 128>}, {transform_indices = @transform_2, window_bounds = array<i64: 1, 128>}, {transform_indices = @transform_3, window_bounds = array<i64: 512, 128>}]} {
    %c0 = arith.constant 0 : index
    %c0_0 = arith.constant 0 : index
    %0 = vector.load %arg2[%c0, %c0_0] : memref<512x32xbf16, #tpu.memory_space<vmem>>, vector<512x32xbf16>
    %c0_1 = arith.constant 0 : index
    %c0_2 = arith.constant 0 : index
    %1 = vector.load %arg3[%c0_1, %c0_2] : memref<32x128xbf16, #tpu.memory_space<vmem>>, vector<32x128xbf16>
    %cst = arith.constant dense<0.000000e+00> : vector<512x128xf32>
    %2 = tpu.matmul %0, %1, %cst {dimension_numbers = #tpu.dot_dimension_numbers<[1], [0], [0], [1], [0, 0, 1, 1], [], []>} : vector<512x32xbf16>, vector<32x128xbf16>, vector<512x128xf32> -> vector<512x128xf32>
    %c0_3 = arith.constant 0 : index
    %c0_4 = arith.constant 0 : index
    %3 = vector.load %arg4[%c0_3, %c0_4] : memref<1x128xf32, #tpu.memory_space<vmem>>, vector<1x128xf32>
    %4 = vector.broadcast %3 : vector<1x128xf32> to vector<512x128xf32>
    %5 = arith.addf %2, %4 : vector<512x128xf32>
    %cst_5 = arith.constant 0.000000e+00 : f32
    %6 = vector.broadcast %cst_5 : f32 to vector<512x128xf32>
    %7 = arith.cmpf ogt, %5, %6 : vector<512x128xf32>
    %cst_6 = arith.constant 1.000000e-01 : f32
    %8 = vector.broadcast %cst_6 : f32 to vector<512x128xf32>
    %9 = arith.mulf %8, %5 : vector<512x128xf32>
    %10 = arith.select %7, %5, %9 : vector<512x128xi1>, vector<512x128xf32>
    %c0_7 = arith.constant 0 : index
    %c0_8 = arith.constant 0 : index
    %11 = vector.load %arg5[%c0_7, %c0_8] : memref<512x128xf32, #tpu.memory_space<vmem>>, vector<512x128xf32>
    tpu.vector_store %arg5[%c0_7, %c0_8], %10 {strides = array<i32>} : memref<512x128xf32, #tpu.memory_space<vmem>>, vector<512x128xf32>,
    return
  }
  func.func @transform_0(%arg0: i32, %arg1: i32) -> (i32, i32) {
    %c0_i32 = arith.constant 0 : i32
    %c0_i32_0 = arith.constant 0 : i32
    return %arg0, %c0_i32 : i32, i32
  }
  func.func @transform_1(%arg0: i32, %arg1: i32) -> (i32, i32) {
    %c0_i32 = arith.constant 0 : i32
    %c0_i32_0 = arith.constant 0 : i32
    return %c0_i32, %arg1 : i32, i32
  }
  func.func @transform_2(%arg0: i32, %arg1: i32) -> (i32, i32) {
    %c0_i32 = arith.constant 0 : i32
    %c0_i32_0 = arith.constant 0 : i32
    return %c0_i32, %arg1 : i32, i32
  }
  func.func @transform_3(%arg0: i32, %arg1: i32) -> (i32, i32) {
    %c0_i32 = arith.constant 0 : i32
    return %arg0, %arg1 : i32, i32
  }
}

</mosaic_0001>

<llo_original>
// kernel: fused_matmul.1
$region0: #{fused_matmul.1}
  #allocation0 [shape = 'u32[]', space=smem, size = 0x4, offset = 0x4, fixed_abs, tag = 'smem constant byte address 0x4 - core index']
  #allocation1 [shape = 'u32[72,128]{1,0:T(1,128)}', space=vmem, size = 0x9000, scoped, tag = 'internal scratch']
  %s0 = inlined_call_operand.vmem [shape: bf16[4096,32], index: 0, kind: input, shape index: {}]
  %s1 = inlined_call_operand.vmem [shape: bf16[32,128], index: 1, kind: input, shape index: {}]
  %s2 = inlined_call_operand.vmem [shape: f32[1,128], index: 2, kind: input, shape index: {}]
  %s3 = inlined_call_operand.vmem [shape: f32[4096,128], index: 3, kind: output, shape index: {}]
  %s4 = sld [smem:[#allocation0]]
  $region45: #{fused_matmul.1} parent=0
    _
  %s6 = ssub.s32 1, %s4
  %s7 = scalar_select 0, %s6, %s4
  loop: start=0, step=1, limit=10
  $region2: #{fused_matmul.1} parent=0 // loop_pre_header
    _
  $region3: #{fused_matmul.1} parent=0 // loop_header
    %s9 = sphi 0, %s13
    %p10 = scmp.ge.s32.totalorder %s9, 10
    %s16 = sphi 0, %s28
    %s17 = sphi 0, %s24
    %s18 = sphi 0, %s16
    %s19 = sphi 0, %s17
    %s20 = sphi 0, %s18
    %s21 = sphi 0, %s19
    %s31 = sphi 0, %s33
    %s34 = sphi 0, %s31
    %s35 = sphi 0, %s34
    %s51 = sphi 0, %s35
    %s57 = sphi 0, %s59
    %s60 = sphi 0, %s57
    %s61 = sphi 0, %s60
    %s77 = sphi 0, %s61
    %s83 = sphi 0, %s85
    %s86 = sphi 0, %s83
    %s87 = sphi 0, %s86
    %s103 = sphi 0, %s87
    %s111 = sphi 0, %s113
    %s114 = sphi 0, %s111
    %s115 = sphi 0, %s114
    %s131 = sphi 0, %s115
  $region4: #{fused_matmul.1} parent=0 // loop_header_branch
    %12 = sbr.rel (%p10) target = $region8
  $region5: #{fused_matmul.1} parent=0 // loop_body
    %s14 = ssub.s32 %s9, 1
    %s15 = ssub.s32 %s9, 2
    %s22 = sadd.s32 1, %s17
    %p23 = scmp.ge.s32.totalorder %s22, 1
    %s24 = scalar_select %p23, 0, %s22
    %s25 = sadd.s32 1, %s16
    %s26 = scalar_select %p23, %s25, %s16
    %p27 = scmp.ge.s32.totalorder %s26, 8
    %s28 = scalar_select %p27, 0, %s26
    %s29 = ssub.s32 %s16, %s28
    %p30 = scmp.eq.s32.totalorder %s29, 0
    %s32 = sadd.s32 %s31, 1
    %s33 = scalar_select %p30, %s31, %s32
    %p36 = pneg %p30
    %p37 = scmp.eq.s32.totalorder %s9, 7
    %p38 = por %p36, %p37
    %p39 = scmp.ne.s32.totalorder %s31, %s34
    %p40 = scmp.eq.s32.totalorder %s9, 0
    %p41 = por %p39, %p40
    %p42 = scmp.ne.s32.totalorder %s31, %s34
    %p43 = scmp.eq.s32.totalorder %s14, 7
    %p44 = por %p42, %p43
    %p45 = scmp.ne.s32.totalorder %s34, %s35
    %p46 = scmp.eq.s32.totalorder %s14, 0
    %p47 = por %p45, %p46
    %p48 = scmp.ne.s32.totalorder %s34, %s35
    %p49 = scmp.eq.s32.totalorder %s15, 7
    %p50 = por %p48, %p49
    %p52 = scmp.ne.s32.totalorder %s35, %s51
    %p53 = scmp.eq.s32.totalorder %s15, 0
    %p54 = por %p52, %p53
    %s55 = ssub.s32 %s17, %s24
    %p56 = scmp.eq.s32.totalorder %s55, 0
    %s58 = sadd.s32 %s57, 1
    %s59 = scalar_select %p56, %s57, %s58
    %p62 = pneg %p56
    %p63 = scmp.eq.s32.totalorder %s9, 7
    %p64 = por %p62, %p63
    %p65 = scmp.ne.s32.totalorder %s57, %s60
    %p66 = scmp.eq.s32.totalorder %s9, 0
    %p67 = por %p65, %p66
    %p68 = scmp.ne.s32.totalorder %s57, %s60
    %p69 = scmp.eq.s32.totalorder %s14, 7
    %p70 = por %p68, %p69
    %p71 = scmp.ne.s32.totalorder %s60, %s61
    %p72 = scmp.eq.s32.totalorder %s14, 0
    %p73 = por %p71, %p72
    %p74 = scmp.ne.s32.totalorder %s60, %s61
    %p75 = scmp.eq.s32.totalorder %s15, 7
    %p76 = por %p74, %p75
    %p78 = scmp.ne.s32.totalorder %s61, %s77
    %p79 = scmp.eq.s32.totalorder %s15, 0
    %p80 = por %p78, %p79
    %s81 = ssub.s32 %s17, %s24
    %p82 = scmp.eq.s32.totalorder %s81, 0
    %s84 = sadd.s32 %s83, 1
    %s85 = scalar_select %p82, %s83, %s84
    %p88 = pneg %p82
    %p89 = scmp.eq.s32.totalorder %s9, 7
    %p90 = por %p88, %p89
    %p91 = scmp.ne.s32.totalorder %s83, %s86
    %p92 = scmp.eq.s32.totalorder %s9, 0
    %p93 = por %p91, %p92
    %p94 = scmp.ne.s32.totalorder %s83, %s86
    %p95 = scmp.eq.s32.totalorder %s14, 7
    %p96 = por %p94, %p95
    %p97 = scmp.ne.s32.totalorder %s86, %s87
    %p98 = scmp.eq.s32.totalorder %s14, 0
    %p99 = por %p97, %p98
    %p100 = scmp.ne.s32.totalorder %s86, %s87
    %p101 = scmp.eq.s32.totalorder %s15, 7
    %p102 = por %p100, %p101
    %p104 = scmp.ne.s32.totalorder %s87, %s103
    %p105 = scmp.eq.s32.totalorder %s15, 0
    %p106 = por %p104, %p105
    %s107 = ssub.s32 %s16, %s28
    %s108 = ssub.s32 %s17, %s24
    %s109 = sor.u32 %s107, %s108
    %p110 = scmp.eq.s32.totalorder %s109, 0
    %s112 = sadd.s32 %s111, 1
    %s113 = scalar_select %p110, %s111, %s112
    %p116 = pneg %p110
    %p117 = scmp.eq.s32.totalorder %s9, 7
    %p118 = por %p116, %p117
    %p119 = scmp.ne.s32.totalorder %s111, %s114
    %p120 = scmp.eq.s32.totalorder %s9, 0
    %p121 = por %p119, %p120
    %p122 = scmp.ne.s32.totalorder %s111, %s114
    %p123 = scmp.eq.s32.totalorder %s14, 7
    %p124 = por %p122, %p123
    %p125 = scmp.ne.s32.totalorder %s114, %s115
    %p126 = scmp.eq.s32.totalorder %s14, 0
    %p127 = por %p125, %p126
    %p128 = scmp.ne.s32.totalorder %s114, %s115
    %p129 = scmp.eq.s32.totalorder %s15, 7
    %p130 = por %p128, %p129
    %p132 = scmp.ne.s32.totalorder %s115, %s131
    %p133 = scmp.eq.s32.totalorder %s15, 0
    %p134 = por %p132, %p133
    %p135 = scmp.le.s32.totalorder 1, %s9
    %p136 = scmp.lt.s32.totalorder %s9, 9
    %p137 = pnand %p135, %p136
    %p138 = pneg %p137
    // Predicated region
    $region9: #{fused_matmul.1} parent=5 // pred_check
      _
    $region10: #{fused_matmul.1} parent=5 // pred_check_branch
      %140 = sbr.rel (%p137) target = $region12
    $region11: #{fused_matmul.1} parent=5 // pred_region
      %s141 = ssub.s32 %s9, 1
      // Predicated region
      $region13: #{fused_matmul.1} parent=11 // pred_check
        %p142 = pneg %p73
      $region14: #{fused_matmul.1} parent=11 // pred_check_branch
        %144 = sbr.rel (%p142) target = $region16
      $region15: #{fused_matmul.1} parent=11 // pred_region
        %p145 = scmp.lt.s32.totalorder %s19, 0
        %s146 = scalar_select %p145, %s19, 0
        %s147 = smul.addr %s146, 4
        %s148 = scalar_lea.vmem %s1, %s147
      $region16: #{fused_matmul.1} parent=11 // pred_fallthru
        _
      // Predicated region
      $region17: #{fused_matmul.1} parent=11 // pred_check
        %p149 = pneg %p99
      $region18: #{fused_matmul.1} parent=11 // pred_check_branch
        %151 = sbr.rel (%p149) target = $region20
      $region19: #{fused_matmul.1} parent=11 // pred_region
        %p152 = scmp.lt.s32.totalorder %s19, 0
        %s153 = scalar_select %p152, %s19, 0
        %s154 = scalar_lea.vmem %s2, %s153
      $region20: #{fused_matmul.1} parent=11 // pred_fallthru
        _
    $region12: #{fused_matmul.1} parent=5 // pred_fallthru
      _
    %p155 = scmp.lt.s32.totalorder %s9, 8
    // Predicated region
    $region21: #{fused_matmul.1} parent=5 // pred_check
      %p156 = pneg %p155
    $region22: #{fused_matmul.1} parent=5 // pred_check_branch
      %158 = sbr.rel (%p156) target = $region24
    $region23: #{fused_matmul.1} parent=5 // pred_region
      // Predicated region
      $region25: #{fused_matmul.1} parent=23 // pred_check
        %p159 = pneg %p41
      $region26: #{fused_matmul.1} parent=23 // pred_check_branch
        %161 = sbr.rel (%p159) target = $region28
      $region27: #{fused_matmul.1} parent=23 // pred_region
        %s162 = smul.u32 64, %s16
        %p163 = scmp.lt.s32.totalorder %s162, 511
        %s164 = scalar_select %p163, %s162, 511
        %s165 = smul.addr %s164, 4
        %s166 = scalar_lea.vmem %s0, %s165
        %s167 = smul.u32 64, %s16
      $region28: #{fused_matmul.1} parent=23 // pred_fallthru
        _
    $region24: #{fused_matmul.1} parent=5 // pred_fallthru
      _
    %p168 = scmp.le.s32.totalorder 1, %s9
    %p169 = scmp.lt.s32.totalorder %s9, 9
    %p170 = pnand %p168, %p169
    %p171 = pneg %p170
    // Predicated region
    $region29: #{fused_matmul.1} parent=5 // pred_check
      _
    $region30: #{fused_matmul.1} parent=5 // pred_check_branch
      %173 = sbr.rel (%p170) target = $region32
    $region31: #{fused_matmul.1} parent=5 // pred_region
      %s174 = ssub.s32 %s9, 1
      %s175 = smul.u32 64, %s18
      %p176 = scmp.lt.s32.totalorder %s175, 511
      %s177 = scalar_select %p176, %s175, 511
      %s178 = smul.addr %s177, 4
      %s179 = scalar_lea.vmem %s0, %s178
      %p180 = pneg %p47
      %p181 = pneg %p44
      %p182 = scmp.lt.s32.totalorder %s19, 0
      %s183 = scalar_select %p182, %s19, 0
      %s184 = smul.addr %s183, 4
      %s185 = scalar_lea.vmem %s1, %s184
      %p186 = pneg %p73
      %p187 = pneg %p70
      %p188 = scmp.lt.s32.totalorder %s19, 0
      %s189 = scalar_select %p188, %s19, 0
      %s190 = scalar_lea.vmem %s2, %s189
      %p191 = pneg %p99
      %p192 = pneg %p96
      %p193 = pneg %p127
      %p194 = pneg %p124
      %s195 = smul.u32 64, %s18
      %p196 = scmp.lt.s32.totalorder %s195, 511
      %s197 = scalar_select %p196, %s195, 511
      %p198 = scmp.lt.s32.totalorder %s19, 0
      %s199 = scalar_select %p198, %s19, 0
      %s200 = sadd.s32 %s199, %s197
      %s201 = smul.addr %s200, 8
      %s202 = scalar_lea.vmem %s3, %s201
      %s203 = smul.u32 64, %s18
      %p204 = scmp.lt.s32.totalorder %s203, 511
      %s205 = scalar_select %p204, %s203, 511
      %s206 = smul.addr %s205, 4
      %s207 = scalar_lea.vmem %s0, %s206
      %s208 = smul.u32 64, %s18
      %p209 = scmp.lt.s32.totalorder %s19, 0
      %s210 = scalar_select %p209, %s19, 0
      %s211 = smul.addr %s210, 4
      %s212 = scalar_lea.vmem %s1, %s211
      %p213 = scmp.lt.s32.totalorder %s19, 0
      %s214 = scalar_select %p213, %s19, 0
      %s215 = scalar_lea.vmem %s2, %s214
      %s216 = smul.u32 64, %s18
      %p217 = scmp.lt.s32.totalorder %s216, 511
      %s218 = scalar_select %p217, %s216, 511
      %p219 = scmp.lt.s32.totalorder %s19, 0
      %s220 = scalar_select %p219, %s19, 0
      %s221 = sadd.s32 %s220, %s218
      %s222 = smul.addr %s221, 8
      %s223 = scalar_lea.vmem %s3, %s222
      %s224 = smul.u32 64, %s18
      %v226 = vld [vmem:[%s207] sm:$0xf]
      %v227 = vld [vmem:[%s207 + $0x4] sm:$0xf]
      %v228 = vld [vmem:[%s207 + $0x8] sm:$0xf]
      %v229 = vld [vmem:[%s207 + $0xc] sm:$0xf]
      %v230 = vld [vmem:[%s207 + $0x10] sm:$0xf]
      %v231 = vld [vmem:[%s207 + $0x14] sm:$0xf]
      %v232 = vld [vmem:[%s207 + $0x18] sm:$0xf]
      %v233 = vld [vmem:[%s207 + $0x1c] sm:$0xf]
      %v234 = vld [vmem:[%s207 + $0x20] sm:$0xf]
      %v235 = vld [vmem:[%s207 + $0x24] sm:$0xf]
      %v236 = vld [vmem:[%s207 + $0x28] sm:$0xf]
      %v237 = vld [vmem:[%s207 + $0x2c] sm:$0xf]
      %v238 = vld [vmem:[%s207 + $0x30] sm:$0xf]
      %v239 = vld [vmem:[%s207 + $0x34] sm:$0xf]
      %v240 = vld [vmem:[%s207 + $0x38] sm:$0xf]
      %v241 = vld [vmem:[%s207 + $0x3c] sm:$0xf]
      %v242 = vld [vmem:[%s207 + $0x40] sm:$0xf]
      %v243 = vld [vmem:[%s207 + $0x44] sm:$0xf]
      %v244 = vld [vmem:[%s207 + $0x48] sm:$0xf]
      %v245 = vld [vmem:[%s207 + $0x4c] sm:$0xf]
      %v246 = vld [vmem:[%s207 + $0x50] sm:$0xf]
      %v247 = vld [vmem:[%s207 + $0x54] sm:$0xf]
      %v248 = vld [vmem:[%s207 + $0x58] sm:$0xf]
      %v249 = vld [vmem:[%s207 + $0x5c] sm:$0xf]
      %v250 = vld [vmem:[%s207 + $0x60] sm:$0xf]
      %v251 = vld [vmem:[%s207 + $0x64] sm:$0xf]
      %v252 = vld [vmem:[%s207 + $0x68] sm:$0xf]
      %v253 = vld [vmem:[%s207 + $0x6c] sm:$0xf]
      %v254 = vld [vmem:[%s207 + $0x70] sm:$0xf]
      %v255 = vld [vmem:[%s207 + $0x74] sm:$0xf]
      %v256 = vld [vmem:[%s207 + $0x78] sm:$0xf]
      %v257 = vld [vmem:[%s207 + $0x7c] sm:$0xf]
      %v258 = vld [vmem:[%s207 + $0x80] sm:$0xf]
      %v259 = vld [vmem:[%s207 + $0x84] sm:$0xf]
      %v260 = vld [vmem:[%s207 + $0x88] sm:$0xf]
      %v261 = vld [vmem:[%s207 + $0x8c] sm:$0xf]
      %v262 = vld [vmem:[%s207 + $0x90] sm:$0xf]
      %v263 = vld [vmem:[%s207 + $0x94] sm:$0xf]
      %v264 = vld [vmem:[%s207 + $0x98] sm:$0xf]
      %v265 = vld [vmem:[%s207 + $0x9c] sm:$0xf]
      %v266 = vld [vmem:[%s207 + $0xa0] sm:$0xf]
      %v267 = vld [vmem:[%s207 + $0xa4] sm:$0xf]
      %v268 = vld [vmem:[%s207 + $0xa8] sm:$0xf]
      %v269 = vld [vmem:[%s207 + $0xac] sm:$0xf]
      %v270 = vld [vmem:[%s207 + $0xb0] sm:$0xf]
      %v271 = vld [vmem:[%s207 + $0xb4] sm:$0xf]
      %v272 = vld [vmem:[%s207 + $0xb8] sm:$0xf]
      %v273 = vld [vmem:[%s207 + $0xbc] sm:$0xf]
      %v274 = vld [vmem:[%s207 + $0xc0] sm:$0xf]
      %v275 = vld [vmem:[%s207 + $0xc4] sm:$0xf]
      %v276 = vld [vmem:[%s207 + $0xc8] sm:$0xf]
      %v277 = vld [vmem:[%s207 + $0xcc] sm:$0xf]
      %v278 = vld [vmem:[%s207 + $0xd0] sm:$0xf]
      %v279 = vld [vmem:[%s207 + $0xd4] sm:$0xf]
      %v280 = vld [vmem:[%s207 + $0xd8] sm:$0xf]
      %v281 = vld [vmem:[%s207 + $0xdc] sm:$0xf]
      %v282 = vld [vmem:[%s207 + $0xe0] sm:$0xf]
      %v283 = vld [vmem:[%s207 + $0xe4] sm:$0xf]
      %v284 = vld [vmem:[%s207 + $0xe8] sm:$0xf]
      %v285 = vld [vmem:[%s207 + $0xec] sm:$0xf]
      %v286 = vld [vmem:[%s207 + $0xf0] sm:$0xf]
      %v287 = vld [vmem:[%s207 + $0xf4] sm:$0xf]
      %v288 = vld [vmem:[%s207 + $0xf8] sm:$0xf]
      %v289 = vld [vmem:[%s207 + $0xfc] sm:$0xf]
      %v290 = vld [vmem:[%s212] sm:$0xf]
      %v291 = vld [vmem:[%s212 + $0x4] sm:$0xf]
      %v292 = vld [vmem:[%s212 + $0x8] sm:$0xf]
      %v293 = vld [vmem:[%s212 + $0xc] sm:$0xf]
      %v294 = vld [vmem:[%s215] sm:$0x1]
      %v296 = vperm.slane %v294, 0
      %v362 = vunpack.c.l.b16 %v226
      %v363 = vunpack.c.l.b16 %v227
      %v364 = vunpack.c.l.b16 %v228
      %v365 = vunpack.c.l.b16 %v229
      %v366 = vunpack.c.l.b16 %v230
      %v367 = vunpack.c.l.b16 %v231
      %v368 = vunpack.c.l.b16 %v232
      %v369 = vunpack.c.l.b16 %v233
      %v370 = vunpack.c.l.b16 %v234
      %v371 = vunpack.c.l.b16 %v235
      %v372 = vunpack.c.l.b16 %v236
      %v373 = vunpack.c.l.b16 %v237
      %v374 = vunpack.c.l.b16 %v238
      %v375 = vunpack.c.l.b16 %v239
      %v376 = vunpack.c.l.b16 %v240
      %v377 = vunpack.c.l.b16 %v241
      %v378 = vunpack.c.l.b16 %v242
      %v379 = vunpack.c.l.b16 %v243
      %v380 = vunpack.c.l.b16 %v244
      %v381 = vunpack.c.l.b16 %v245
      %v382 = vunpack.c.l.b16 %v246
      %v383 = vunpack.c.l.b16 %v247
      %v384 = vunpack.c.l.b16 %v248
      %v385 = vunpack.c.l.b16 %v249
      %v386 = vunpack.c.l.b16 %v250
      %v387 = vunpack.c.l.b16 %v251
      %v388 = vunpack.c.l.b16 %v252
      %v389 = vunpack.c.l.b16 %v253
      %v390 = vunpack.c.l.b16 %v254
      %v391 = vunpack.c.l.b16 %v255
      %v392 = vunpack.c.l.b16 %v256
      %v393 = vunpack.c.l.b16 %v257
      %v394 = vunpack.c.l.b16 %v258
      %v395 = vunpack.c.l.b16 %v259
      %v396 = vunpack.c.l.b16 %v260
      %v397 = vunpack.c.l.b16 %v261
      %v398 = vunpack.c.l.b16 %v262
      %v399 = vunpack.c.l.b16 %v263
      %v400 = vunpack.c.l.b16 %v264
      %v401 = vunpack.c.l.b16 %v265
      %v402 = vunpack.c.l.b16 %v266
      %v403 = vunpack.c.l.b16 %v267
      %v404 = vunpack.c.l.b16 %v268
      %v405 = vunpack.c.l.b16 %v269
      %v406 = vunpack.c.l.b16 %v270
      %v407 = vunpack.c.l.b16 %v271
      %v408 = vunpack.c.l.b16 %v272
      %v409 = vunpack.c.l.b16 %v273
      %v410 = vunpack.c.l.b16 %v274
      %v411 = vunpack.c.l.b16 %v275
      %v412 = vunpack.c.l.b16 %v276
      %v413 = vunpack.c.l.b16 %v277
      %v414 = vunpack.c.l.b16 %v278
      %v415 = vunpack.c.l.b16 %v279
      %v416 = vunpack.c.l.b16 %v280
      %v417 = vunpack.c.l.b16 %v281
      %v418 = vunpack.c.l.b16 %v282
      %v419 = vunpack.c.l.b16 %v283
      %v420 = vunpack.c.l.b16 %v284
      %v421 = vunpack.c.l.b16 %v285
      %v422 = vunpack.c.l.b16 %v286
      %v423 = vunpack.c.l.b16 %v287
      %v424 = vunpack.c.l.b16 %v288
      %v425 = vunpack.c.l.b16 %v289
      %v426 = vpack.c.b16 %v363, %v362
      %v427 = vpack.c.b16 %v365, %v364
      %v428 = vpack.c.b16 %v367, %v366
      %v429 = vpack.c.b16 %v369, %v368
      %v430 = vpack.c.b16 %v371, %v370
      %v431 = vpack.c.b16 %v373, %v372
      %v432 = vpack.c.b16 %v375, %v374
      %v433 = vpack.c.b16 %v377, %v376
      %v434 = vpack.c.b16 %v379, %v378
      %v435 = vpack.c.b16 %v381, %v380
      %v436 = vpack.c.b16 %v383, %v382
      %v437 = vpack.c.b16 %v385, %v384
      %v438 = vpack.c.b16 %v387, %v386
      %v439 = vpack.c.b16 %v389, %v388
      %v440 = vpack.c.b16 %v391, %v390
      %v441 = vpack.c.b16 %v393, %v392
      %v442 = vpack.c.b16 %v395, %v394
      %v443 = vpack.c.b16 %v397, %v396
      %v444 = vpack.c.b16 %v399, %v398
      %v445 = vpack.c.b16 %v401, %v400
      %v446 = vpack.c.b16 %v403, %v402
      %v447 = vpack.c.b16 %v405, %v404
      %v448 = vpack.c.b16 %v407, %v406
      %v449 = vpack.c.b16 %v409, %v408
      %v450 = vpack.c.b16 %v411, %v410
      %v451 = vpack.c.b16 %v413, %v412
      %v452 = vpack.c.b16 %v415, %v414
      %v453 = vpack.c.b16 %v417, %v416
      %v454 = vpack.c.b16 %v419, %v418
      %v455 = vpack.c.b16 %v421, %v420
      %v456 = vpack.c.b16 %v423, %v422
      %v457 = vpack.c.b16 %v425, %v424
      %v462 = vunpack.c.l.b16 %v290
      %v463 = vunpack.c.l.b16 %v291
      %v464 = vunpack.c.l.b16 %v292
      %v465 = vunpack.c.l.b16 %v293
      %v466 = vpack.c.b16 %v463, %v462
      %v467 = vpack.c.b16 %v465, %v464
      %vm470 = vcmask 261120
      %v472 = vsel %vm470, %v426, 0
      %v475 = vsel %vm470, %v427, 0
      %v478 = vsel %vm470, %v428, 0
      %v481 = vsel %vm470, %v429, 0
      %v484 = vsel %vm470, %v430, 0
      %v487 = vsel %vm470, %v431, 0
      %v490 = vsel %vm470, %v432, 0
      %v493 = vsel %vm470, %v433, 0
      %v496 = vsel %vm470, %v434, 0
      %v499 = vsel %vm470, %v435, 0
      %v502 = vsel %vm470, %v436, 0
      %v505 = vsel %vm470, %v437, 0
      %v508 = vsel %vm470, %v438, 0
      %v511 = vsel %vm470, %v439, 0
      %v514 = vsel %vm470, %v440, 0
      %v517 = vsel %vm470, %v441, 0
      %v520 = vsel %vm470, %v442, 0
      %v523 = vsel %vm470, %v443, 0
      %v526 = vsel %vm470, %v444, 0
      %v529 = vsel %vm470, %v445, 0
      %v532 = vsel %vm470, %v446, 0
      %v535 = vsel %vm470, %v447, 0
      %v538 = vsel %vm470, %v448, 0
      %v541 = vsel %vm470, %v449, 0
      %v544 = vsel %vm470, %v450, 0
      %v547 = vsel %vm470, %v451, 0
      %v550 = vsel %vm470, %v452, 0
      %v553 = vsel %vm470, %v453, 0
      %v556 = vsel %vm470, %v454, 0
      %v559 = vsel %vm470, %v455, 0
      %v562 = vsel %vm470, %v456, 0
      %v565 = vsel %vm470, %v457, 0
      %567 = vmatpush.bf16.msra.mxu0 0
      %568 = vmatpush.bf16.msra.mxu0 0
      %569 = vmatpush.bf16.msra.mxu0 0
      %570 = vmatpush.bf16.msra.mxu0 0
      %571 = vmatpush.bf16.msra.mxu0 0
      %572 = vmatpush.bf16.msra.mxu0 0
      %573 = vmatpush.bf16.msra.mxu0 %v467
      %574 = vmatpush.bf16.msra.mxu0 %v466
      %575 = vmatmul.bf16.gmra.mxu0 %v472
      %v576 = vpop.f32.mrf.mxu0
      %v577 = vadd.f32 %v296, %v576
      %v578 = vpop.f32.mrf.mxu0
      %v579 = vadd.f32 %v296, %v578
      %580 = vmatmul.bf16.gmra.mxu0 %v475
      %v581 = vpop.f32.mrf.mxu0
      %v582 = vadd.f32 %v296, %v581
      %v583 = vpop.f32.mrf.mxu0
      %v584 = vadd.f32 %v296, %v583
      %585 = vmatmul.bf16.gmra.mxu0 %v478
      %v586 = vpop.f32.mrf.mxu0
      %v587 = vadd.f32 %v296, %v586
      %v588 = vpop.f32.mrf.mxu0
      %v589 = vadd.f32 %v296, %v588
      %590 = vmatmul.bf16.gmra.mxu0 %v481
      %v591 = vpop.f32.mrf.mxu0
      %v592 = vadd.f32 %v296, %v591
      %v593 = vpop.f32.mrf.mxu0
      %v594 = vadd.f32 %v296, %v593
      %595 = vmatmul.bf16.gmra.mxu0 %v484
      %v596 = vpop.f32.mrf.mxu0
      %v597 = vadd.f32 %v296, %v596
      %v598 = vpop.f32.mrf.mxu0
      %v599 = vadd.f32 %v296, %v598
      %600 = vmatmul.bf16.gmra.mxu0 %v487
      %v601 = vpop.f32.mrf.mxu0
      %v602 = vadd.f32 %v296, %v601
      %v603 = vpop.f32.mrf.mxu0
      %v604 = vadd.f32 %v296, %v603
      %605 = vmatmul.bf16.gmra.mxu0 %v490
      %v606 = vpop.f32.mrf.mxu0
      %v607 = vadd.f32 %v296, %v606
      %v608 = vpop.f32.mrf.mxu0
      %v609 = vadd.f32 %v296, %v608
      %610 = vmatmul.bf16.gmra.mxu0 %v493
      %v611 = vpop.f32.mrf.mxu0
      %v612 = vadd.f32 %v296, %v611
      %v613 = vpop.f32.mrf.mxu0
      %v614 = vadd.f32 %v296, %v613
      %615 = vmatmul.bf16.gmra.mxu0 %v496
      %v616 = vpop.f32.mrf.mxu0
      %v617 = vadd.f32 %v296, %v616
      %v618 = vpop.f32.mrf.mxu0
      %v619 = vadd.f32 %v296, %v618
      %620 = vmatmul.bf16.gmra.mxu0 %v499
      %v621 = vpop.f32.mrf.mxu0
      %v622 = vadd.f32 %v296, %v621
      %v623 = vpop.f32.mrf.mxu0
      %v624 = vadd.f32 %v296, %v623
      %625 = vmatmul.bf16.gmra.mxu0 %v502
      %v626 = vpop.f32.mrf.mxu0
      %v627 = vadd.f32 %v296, %v626
      %v628 = vpop.f32.mrf.mxu0
      %v629 = vadd.f32 %v296, %v628
      %630 = vmatmul.bf16.gmra.mxu0 %v505
      %v631 = vpop.f32.mrf.mxu0
      %v632 = vadd.f32 %v296, %v631
      %v633 = vpop.f32.mrf.mxu0
      %v634 = vadd.f32 %v296, %v633
      %635 = vmatmul.bf16.gmra.mxu0 %v508
      %v636 = vpop.f32.mrf.mxu0
      %v637 = vadd.f32 %v296, %v636
      %v638 = vpop.f32.mrf.mxu0
      %v639 = vadd.f32 %v296, %v638
      %640 = vmatmul.bf16.gmra.mxu0 %v511
      %v641 = vpop.f32.mrf.mxu0
      %v642 = vadd.f32 %v296, %v641
      %v643 = vpop.f32.mrf.mxu0
      %v644 = vadd.f32 %v296, %v643
      %645 = vmatmul.bf16.gmra.mxu0 %v514
      %v646 = vpop.f32.mrf.mxu0
      %v647 = vadd.f32 %v296, %v646
      %v648 = vpop.f32.mrf.mxu0
      %v649 = vadd.f32 %v296, %v648
      %650 = vmatmul.bf16.gmra.mxu0 %v517
      %v651 = vpop.f32.mrf.mxu0
      %v652 = vadd.f32 %v296, %v651
      %v653 = vpop.f32.mrf.mxu0
      %v654 = vadd.f32 %v296, %v653
      %655 = vmatmul.bf16.gmra.mxu0 %v520
      %v656 = vpop.f32.mrf.mxu0
      %v657 = vadd.f32 %v296, %v656
      %v658 = vpop.f32.mrf.mxu0
      %v659 = vadd.f32 %v296, %v658
      %660 = vmatmul.bf16.gmra.mxu0 %v523
      %v661 = vpop.f32.mrf.mxu0
      %v662 = vadd.f32 %v296, %v661
      %v663 = vpop.f32.mrf.mxu0
      %v664 = vadd.f32 %v296, %v663
      %665 = vmatmul.bf16.gmra.mxu0 %v526
      %v666 = vpop.f32.mrf.mxu0
      %v667 = vadd.f32 %v296, %v666
      %v668 = vpop.f32.mrf.mxu0
      %v669 = vadd.f32 %v296, %v668
      %670 = vmatmul.bf16.gmra.mxu0 %v529
      %v671 = vpop.f32.mrf.mxu0
      %v672 = vadd.f32 %v296, %v671
      %v673 = vpop.f32.mrf.mxu0
      %v674 = vadd.f32 %v296, %v673
      %675 = vmatmul.bf16.gmra.mxu0 %v532
      %v676 = vpop.f32.mrf.mxu0
      %v677 = vadd.f32 %v296, %v676
      %v678 = vpop.f32.mrf.mxu0
      %v679 = vadd.f32 %v296, %v678
      %680 = vmatmul.bf16.gmra.mxu0 %v535
      %v681 = vpop.f32.mrf.mxu0
      %v682 = vadd.f32 %v296, %v681
      %v683 = vpop.f32.mrf.mxu0
      %v684 = vadd.f32 %v296, %v683
      %685 = vmatmul.bf16.gmra.mxu0 %v538
      %v686 = vpop.f32.mrf.mxu0
      %v687 = vadd.f32 %v296, %v686
      %v688 = vpop.f32.mrf.mxu0
      %v689 = vadd.f32 %v296, %v688
      %690 = vmatmul.bf16.gmra.mxu0 %v541
      %v691 = vpop.f32.mrf.mxu0
      %v692 = vadd.f32 %v296, %v691
      %v693 = vpop.f32.mrf.mxu0
      %v694 = vadd.f32 %v296, %v693
      %695 = vmatmul.bf16.gmra.mxu0 %v544
      %v696 = vpop.f32.mrf.mxu0
      %v697 = vadd.f32 %v296, %v696
      %v698 = vpop.f32.mrf.mxu0
      %v699 = vadd.f32 %v296, %v698
      %700 = vmatmul.bf16.gmra.mxu0 %v547
      %v701 = vpop.f32.mrf.mxu0
      %v702 = vadd.f32 %v296, %v701
      %v703 = vpop.f32.mrf.mxu0
      %v704 = vadd.f32 %v296, %v703
      %705 = vmatmul.bf16.gmra.mxu0 %v550
      %v706 = vpop.f32.mrf.mxu0
      %v707 = vadd.f32 %v296, %v706
      %v708 = vpop.f32.mrf.mxu0
      %v709 = vadd.f32 %v296, %v708
      %710 = vmatmul.bf16.gmra.mxu0 %v553
      %v711 = vpop.f32.mrf.mxu0
      %v712 = vadd.f32 %v296, %v711
      %v713 = vpop.f32.mrf.mxu0
      %v714 = vadd.f32 %v296, %v713
      %715 = vmatmul.bf16.gmra.mxu0 %v556
      %v716 = vpop.f32.mrf.mxu0
      %v717 = vadd.f32 %v296, %v716
      %v718 = vpop.f32.mrf.mxu0
      %v719 = vadd.f32 %v296, %v718
      %720 = vmatmul.bf16.gmra.mxu0 %v559
      %v721 = vpop.f32.mrf.mxu0
      %v722 = vadd.f32 %v296, %v721
      %v723 = vpop.f32.mrf.mxu0
      %v724 = vadd.f32 %v296, %v723
      %725 = vmatmul.bf16.gmra.mxu0 %v562
      %v726 = vpop.f32.mrf.mxu0
      %v727 = vadd.f32 %v296, %v726
      %v728 = vpop.f32.mrf.mxu0
      %v729 = vadd.f32 %v296, %v728
      %730 = vmatmul.bf16.gmra.mxu0 %v565
      %v731 = vpop.f32.mrf.mxu0
      %v732 = vadd.f32 %v296, %v731
      %v733 = vpop.f32.mrf.mxu0
      %v734 = vadd.f32 %v296, %v733
      %735 = vdwg.mxu0
      %vm736 = vcmp.gt.f32.partialorder %v577, 0.0
      %vm737 = vcmp.gt.f32.partialorder %v579, 0.0
      %vm738 = vcmp.gt.f32.partialorder %v582, 0.0
      %vm739 = vcmp.gt.f32.partialorder %v584, 0.0
      %vm740 = vcmp.gt.f32.partialorder %v587, 0.0
      %vm741 = vcmp.gt.f32.partialorder %v589, 0.0
      %vm742 = vcmp.gt.f32.partialorder %v592, 0.0
      %vm743 = vcmp.gt.f32.partialorder %v594, 0.0
      %vm744 = vcmp.gt.f32.partialorder %v597, 0.0
      %vm745 = vcmp.gt.f32.partialorder %v599, 0.0
      %vm746 = vcmp.gt.f32.partialorder %v602, 0.0
      %vm747 = vcmp.gt.f32.partialorder %v604, 0.0
      %vm748 = vcmp.gt.f32.partialorder %v607, 0.0
      %vm749 = vcmp.gt.f32.partialorder %v609, 0.0
      %vm750 = vcmp.gt.f32.partialorder %v612, 0.0
      %vm751 = vcmp.gt.f32.partialorder %v614, 0.0
      %vm752 = vcmp.gt.f32.partialorder %v617, 0.0
      %vm753 = vcmp.gt.f32.partialorder %v619, 0.0
      %vm754 = vcmp.gt.f32.partialorder %v622, 0.0
      %vm755 = vcmp.gt.f32.partialorder %v624, 0.0
      %vm756 = vcmp.gt.f32.partialorder %v627, 0.0
      %vm757 = vcmp.gt.f32.partialorder %v629, 0.0
      %vm758 = vcmp.gt.f32.partialorder %v632, 0.0
      %vm759 = vcmp.gt.f32.partialorder %v634, 0.0
      %vm760 = vcmp.gt.f32.partialorder %v637, 0.0
      %vm761 = vcmp.gt.f32.partialorder %v639, 0.0
      %vm762 = vcmp.gt.f32.partialorder %v642, 0.0
      %vm763 = vcmp.gt.f32.partialorder %v644, 0.0
      %vm764 = vcmp.gt.f32.partialorder %v647, 0.0
      %vm765 = vcmp.gt.f32.partialorder %v649, 0.0
      %vm766 = vcmp.gt.f32.partialorder %v652, 0.0
      %vm767 = vcmp.gt.f32.partialorder %v654, 0.0
      %vm768 = vcmp.gt.f32.partialorder %v657, 0.0
      %vm769 = vcmp.gt.f32.partialorder %v659, 0.0
      %vm770 = vcmp.gt.f32.partialorder %v662, 0.0
      %vm771 = vcmp.gt.f32.partialorder %v664, 0.0
      %vm772 = vcmp.gt.f32.partialorder %v667, 0.0
      %vm773 = vcmp.gt.f32.partialorder %v669, 0.0
      %vm774 = vcmp.gt.f32.partialorder %v672, 0.0
      %vm775 = vcmp.gt.f32.partialorder %v674, 0.0
      %vm776 = vcmp.gt.f32.partialorder %v677, 0.0
      %vm777 = vcmp.gt.f32.partialorder %v679, 0.0
      %vm778 = vcmp.gt.f32.partialorder %v682, 0.0
      %vm779 = vcmp.gt.f32.partialorder %v684, 0.0
      %vm780 = vcmp.gt.f32.partialorder %v687, 0.0
      %vm781 = vcmp.gt.f32.partialorder %v689, 0.0
      %vm782 = vcmp.gt.f32.partialorder %v692, 0.0
      %vm783 = vcmp.gt.f32.partialorder %v694, 0.0
      %vm784 = vcmp.gt.f32.partialorder %v697, 0.0
      %vm785 = vcmp.gt.f32.partialorder %v699, 0.0
      %vm786 = vcmp.gt.f32.partialorder %v702, 0.0
      %vm787 = vcmp.gt.f32.partialorder %v704, 0.0
      %vm788 = vcmp.gt.f32.partialorder %v707, 0.0
      %vm789 = vcmp.gt.f32.partialorder %v709, 0.0
      %vm790 = vcmp.gt.f32.partialorder %v712, 0.0
      %vm791 = vcmp.gt.f32.partialorder %v714, 0.0
      %vm792 = vcmp.gt.f32.partialorder %v717, 0.0
      %vm793 = vcmp.gt.f32.partialorder %v719, 0.0
      %vm794 = vcmp.gt.f32.partialorder %v722, 0.0
      %vm795 = vcmp.gt.f32.partialorder %v724, 0.0
      %vm796 = vcmp.gt.f32.partialorder %v727, 0.0
      %vm797 = vcmp.gt.f32.partialorder %v729, 0.0
      %vm798 = vcmp.gt.f32.partialorder %v732, 0.0
      %vm799 = vcmp.gt.f32.partialorder %v734, 0.0
      %v800 = vmul.f32 %v577, 0.1
      %v801 = vmul.f32 %v579, 0.1
      %v802 = vmul.f32 %v582, 0.1
      %v803 = vmul.f32 %v584, 0.1
      %v804 = vmul.f32 %v587, 0.1
      %v805 = vmul.f32 %v589, 0.1
      %v806 = vmul.f32 %v592, 0.1
      %v807 = vmul.f32 %v594, 0.1
      %v808 = vmul.f32 %v597, 0.1
      %v809 = vmul.f32 %v599, 0.1
      %v810 = vmul.f32 %v602, 0.1
      %v811 = vmul.f32 %v604, 0.1
      %v812 = vmul.f32 %v607, 0.1
      %v813 = vmul.f32 %v609, 0.1
      %v814 = vmul.f32 %v612, 0.1
      %v815 = vmul.f32 %v614, 0.1
      %v816 = vmul.f32 %v617, 0.1
      %v817 = vmul.f32 %v619, 0.1
      %v818 = vmul.f32 %v622, 0.1
      %v819 = vmul.f32 %v624, 0.1
      %v820 = vmul.f32 %v627, 0.1
      %v821 = vmul.f32 %v629, 0.1
      %v822 = vmul.f32 %v632, 0.1
      %v823 = vmul.f32 %v634, 0.1
      %v824 = vmul.f32 %v637, 0.1
      %v825 = vmul.f32 %v639, 0.1
      %v826 = vmul.f32 %v642, 0.1
      %v827 = vmul.f32 %v644, 0.1
      %v828 = vmul.f32 %v647, 0.1
      %v829 = vmul.f32 %v649, 0.1
      %v830 = vmul.f32 %v652, 0.1
      %v831 = vmul.f32 %v654, 0.1
      %v832 = vmul.f32 %v657, 0.1
      %v833 = vmul.f32 %v659, 0.1
      %v834 = vmul.f32 %v662, 0.1
      %v835 = vmul.f32 %v664, 0.1
      %v836 = vmul.f32 %v667, 0.1
      %v837 = vmul.f32 %v669, 0.1
      %v838 = vmul.f32 %v672, 0.1
      %v839 = vmul.f32 %v674, 0.1
      %v840 = vmul.f32 %v677, 0.1
      %v841 = vmul.f32 %v679, 0.1
      %v842 = vmul.f32 %v682, 0.1
      %v843 = vmul.f32 %v684, 0.1
      %v844 = vmul.f32 %v687, 0.1
      %v845 = vmul.f32 %v689, 0.1
      %v846 = vmul.f32 %v692, 0.1
      %v847 = vmul.f32 %v694, 0.1
      %v848 = vmul.f32 %v697, 0.1
      %v849 = vmul.f32 %v699, 0.1
      %v850 = vmul.f32 %v702, 0.1
      %v851 = vmul.f32 %v704, 0.1
      %v852 = vmul.f32 %v707, 0.1
      %v853 = vmul.f32 %v709, 0.1
      %v854 = vmul.f32 %v712, 0.1
      %v855 = vmul.f32 %v714, 0.1
      %v856 = vmul.f32 %v717, 0.1
      %v857 = vmul.f32 %v719, 0.1
      %v858 = vmul.f32 %v722, 0.1
      %v859 = vmul.f32 %v724, 0.1
      %v860 = vmul.f32 %v727, 0.1
      %v861 = vmul.f32 %v729, 0.1
      %v862 = vmul.f32 %v732, 0.1
      %v863 = vmul.f32 %v734, 0.1
      %v864 = vsel %vm736, %v577, %v800
      %v865 = vsel %vm737, %v579, %v801
      %v866 = vsel %vm738, %v582, %v802
      %v867 = vsel %vm739, %v584, %v803
      %v868 = vsel %vm740, %v587, %v804
      %v869 = vsel %vm741, %v589, %v805
      %v870 = vsel %vm742, %v592, %v806
      %v871 = vsel %vm743, %v594, %v807
      %v872 = vsel %vm744, %v597, %v808
      %v873 = vsel %vm745, %v599, %v809
      %v874 = vsel %vm746, %v602, %v810
      %v875 = vsel %vm747, %v604, %v811
      %v876 = vsel %vm748, %v607, %v812
      %v877 = vsel %vm749, %v609, %v813
      %v878 = vsel %vm750, %v612, %v814
      %v879 = vsel %vm751, %v614, %v815
      %v880 = vsel %vm752, %v617, %v816
      %v881 = vsel %vm753, %v619, %v817
      %v882 = vsel %vm754, %v622, %v818
      %v883 = vsel %vm755, %v624, %v819
      %v884 = vsel %vm756, %v627, %v820
      %v885 = vsel %vm757, %v629, %v821
      %v886 = vsel %vm758, %v632, %v822
      %v887 = vsel %vm759, %v634, %v823
      %v888 = vsel %vm760, %v637, %v824
      %v889 = vsel %vm761, %v639, %v825
      %v890 = vsel %vm762, %v642, %v826
      %v891 = vsel %vm763, %v644, %v827
      %v892 = vsel %vm764, %v647, %v828
      %v893 = vsel %vm765, %v649, %v829
      %v894 = vsel %vm766, %v652, %v830
      %v895 = vsel %vm767, %v654, %v831
      %v896 = vsel %vm768, %v657, %v832
      %v897 = vsel %vm769, %v659, %v833
      %v898 = vsel %vm770, %v662, %v834
      %v899 = vsel %vm771, %v664, %v835
      %v900 = vsel %vm772, %v667, %v836
      %v901 = vsel %vm773, %v669, %v837
      %v902 = vsel %vm774, %v672, %v838
      %v903 = vsel %vm775, %v674, %v839
      %v904 = vsel %vm776, %v677, %v840
      %v905 = vsel %vm777, %v679, %v841
      %v906 = vsel %vm778, %v682, %v842
      %v907 = vsel %vm779, %v684, %v843
      %v908 = vsel %vm780, %v687, %v844
      %v909 = vsel %vm781, %v689, %v845
      %v910 = vsel %vm782, %v692, %v846
      %v911 = vsel %vm783, %v694, %v847
      %v912 = vsel %vm784, %v697, %v848
      %v913 = vsel %vm785, %v699, %v849
      %v914 = vsel %vm786, %v702, %v850
      %v915 = vsel %vm787, %v704, %v851
      %v916 = vsel %vm788, %v707, %v852
      %v917 = vsel %vm789, %v709, %v853
      %v918 = vsel %vm790, %v712, %v854
      %v919 = vsel %vm791, %v714, %v855
      %v920 = vsel %vm792, %v717, %v856
      %v921 = vsel %vm793, %v719, %v857
      %v922 = vsel %vm794, %v722, %v858
      %v923 = vsel %vm795, %v724, %v859
      %v924 = vsel %vm796, %v727, %v860
      %v925 = vsel %vm797, %v729, %v861
      %v926 = vsel %vm798, %v732, %v862
      %v927 = vsel %vm799, %v734, %v863
      %928 = vst [vmem:[%s223] sm:$0xff] %v864
      %929 = vst [vmem:[%s223 + $0x8] sm:$0xff] %v865
      %930 = vst [vmem:[%s223 + $0x10] sm:$0xff] %v866
      %931 = vst [vmem:[%s223 + $0x18] sm:$0xff] %v867
      %932 = vst [vmem:[%s223 + $0x20] sm:$0xff] %v868
      %933 = vst [vmem:[%s223 + $0x28] sm:$0xff] %v869
      %934 = vst [vmem:[%s223 + $0x30] sm:$0xff] %v870
      %935 = vst [vmem:[%s223 + $0x38] sm:$0xff] %v871
      %936 = vst [vmem:[%s223 + $0x40] sm:$0xff] %v872
      %937 = vst [vmem:[%s223 + $0x48] sm:$0xff] %v873
      %938 = vst [vmem:[%s223 + $0x50] sm:$0xff] %v874
      %939 = vst [vmem:[%s223 + $0x58] sm:$0xff] %v875
      %940 = vst [vmem:[%s223 + $0x60] sm:$0xff] %v876
      %941 = vst [vmem:[%s223 + $0x68] sm:$0xff] %v877
      %942 = vst [vmem:[%s223 + $0x70] sm:$0xff] %v878
      %943 = vst [vmem:[%s223 + $0x78] sm:$0xff] %v879
      %944 = vst [vmem:[%s223 + $0x80] sm:$0xff] %v880
      %945 = vst [vmem:[%s223 + $0x88] sm:$0xff] %v881
      %946 = vst [vmem:[%s223 + $0x90] sm:$0xff] %v882
      %947 = vst [vmem:[%s223 + $0x98] sm:$0xff] %v883
      %948 = vst [vmem:[%s223 + $0xa0] sm:$0xff] %v884
      %949 = vst [vmem:[%s223 + $0xa8] sm:$0xff] %v885
      %950 = vst [vmem:[%s223 + $0xb0] sm:$0xff] %v886
      %951 = vst [vmem:[%s223 + $0xb8] sm:$0xff] %v887
      %952 = vst [vmem:[%s223 + $0xc0] sm:$0xff] %v888
      %953 = vst [vmem:[%s223 + $0xc8] sm:$0xff] %v889
      %954 = vst [vmem:[%s223 + $0xd0] sm:$0xff] %v890
      %955 = vst [vmem:[%s223 + $0xd8] sm:$0xff] %v891
      %956 = vst [vmem:[%s223 + $0xe0] sm:$0xff] %v892
      %957 = vst [vmem:[%s223 + $0xe8] sm:$0xff] %v893
      %958 = vst [vmem:[%s223 + $0xf0] sm:$0xff] %v894
      %959 = vst [vmem:[%s223 + $0xf8] sm:$0xff] %v895
      %960 = vst [vmem:[%s223 + $0x100] sm:$0xff] %v896
      %961 = vst [vmem:[%s223 + $0x108] sm:$0xff] %v897
      %962 = vst [vmem:[%s223 + $0x110] sm:$0xff] %v898
      %963 = vst [vmem:[%s223 + $0x118] sm:$0xff] %v899
      %964 = vst [vmem:[%s223 + $0x120] sm:$0xff] %v900
      %965 = vst [vmem:[%s223 + $0x128] sm:$0xff] %v901
      %966 = vst [vmem:[%s223 + $0x130] sm:$0xff] %v902
      %967 = vst [vmem:[%s223 + $0x138] sm:$0xff] %v903
      %968 = vst [vmem:[%s223 + $0x140] sm:$0xff] %v904
      %969 = vst [vmem:[%s223 + $0x148] sm:$0xff] %v905
      %970 = vst [vmem:[%s223 + $0x150] sm:$0xff] %v906
      %971 = vst [vmem:[%s223 + $0x158] sm:$0xff] %v907
      %972 = vst [vmem:[%s223 + $0x160] sm:$0xff] %v908
      %973 = vst [vmem:[%s223 + $0x168] sm:$0xff] %v909
      %974 = vst [vmem:[%s223 + $0x170] sm:$0xff] %v910
      %975 = vst [vmem:[%s223 + $0x178] sm:$0xff] %v911
      %976 = vst [vmem:[%s223 + $0x180] sm:$0xff] %v912
      %977 = vst [vmem:[%s223 + $0x188] sm:$0xff] %v913
      %978 = vst [vmem:[%s223 + $0x190] sm:$0xff] %v914
      %979 = vst [vmem:[%s223 + $0x198] sm:$0xff] %v915
      %980 = vst [vmem:[%s223 + $0x1a0] sm:$0xff] %v916
      %981 = vst [vmem:[%s223 + $0x1a8] sm:$0xff] %v917
      %982 = vst [vmem:[%s223 + $0x1b0] sm:$0xff] %v918
      %983 = vst [vmem:[%s223 + $0x1b8] sm:$0xff] %v919
      %984 = vst [vmem:[%s223 + $0x1c0] sm:$0xff] %v920
      %985 = vst [vmem:[%s223 + $0x1c8] sm:$0xff] %v921
      %986 = vst [vmem:[%s223 + $0x1d0] sm:$0xff] %v922
      %987 = vst [vmem:[%s223 + $0x1d8] sm:$0xff] %v923
      %988 = vst [vmem:[%s223 + $0x1e0] sm:$0xff] %v924
      %989 = vst [vmem:[%s223 + $0x1e8] sm:$0xff] %v925
      %990 = vst [vmem:[%s223 + $0x1f0] sm:$0xff] %v926
      %991 = vst [vmem:[%s223 + $0x1f8] sm:$0xff] %v927
      %s992 = smul.u32 64, %s18
      %p993 = scmp.lt.s32.totalorder %s992, 511
      %s994 = scalar_select %p993, %s992, 511
      %p995 = scmp.lt.s32.totalorder %s19, 0
      %s996 = scalar_select %p995, %s19, 0
      %s997 = sadd.s32 %s996, %s994
      %s998 = smul.addr %s997, 8
      %s999 = scalar_lea.vmem %s3, %s998
      // Predicated region
      $region33: #{fused_matmul.1} parent=31 // pred_check
        %p1000 = pneg %p124
      $region34: #{fused_matmul.1} parent=31 // pred_check_branch
        %1002 = sbr.rel (%p1000) target = $region36
      $region35: #{fused_matmul.1} parent=31 // pred_region
        %s1003 = smul.u32 64, %s18
      $region36: #{fused_matmul.1} parent=31 // pred_fallthru
        _
    $region32: #{fused_matmul.1} parent=5 // pred_fallthru
      _
    %p1004 = scmp.le.s32.totalorder 2, %s9
    // Predicated region
    $region37: #{fused_matmul.1} parent=5 // pred_check
      %p1005 = pneg %p1004
    $region38: #{fused_matmul.1} parent=5 // pred_check_branch
      %1007 = sbr.rel (%p1005) target = $region40
    $region39: #{fused_matmul.1} parent=5 // pred_region
      %s1008 = ssub.s32 %s9, 2
      // Predicated region
      $region41: #{fused_matmul.1} parent=39 // pred_check
        %p1009 = pneg %p130
      $region42: #{fused_matmul.1} parent=39 // pred_check_branch
        %1011 = sbr.rel (%p1009) target = $region44
      $region43: #{fused_matmul.1} parent=39 // pred_region
        %s1012 = smul.u32 64, %s20
        %p1013 = scmp.lt.s32.totalorder %s1012, 511
        %s1014 = scalar_select %p1013, %s1012, 511
        %p1015 = scmp.lt.s32.totalorder %s21, 0
        %s1016 = scalar_select %p1015, %s21, 0
        %s1017 = sadd.s32 %s1016, %s1014
        %s1018 = smul.addr %s1017, 8
        %s1019 = scalar_lea.vmem %s3, %s1018
      $region44: #{fused_matmul.1} parent=39 // pred_fallthru
        _
    $region40: #{fused_matmul.1} parent=5 // pred_fallthru
      _
  $region6: #{fused_matmul.1} parent=0 // loop_footer
    %s13 = sadd.s32 1, %s9
  $region7: #{fused_matmul.1} parent=0 // loop_footer_branch
    %8 = sbr.rel target = $region3
  $region8: #{fused_matmul.1} parent=0 // loop_exit
    _

</llo_original>
